<compile_context>
chip_gen: v6e
topology: v6e:2x2x1
jax: 0.10.0
libtpu: 0.0.40
codegen_flags: <defaults>
</compile_context>

<pallas_src>
import jax
import jax.numpy as jnp
from jax.experimental import pallas as pl
from jax.experimental.pallas import tpu as pltpu


def _round_up(x, m):
    return (x + m - 1) // m * m


def _mac(xb, w2d, c_in):
    """(tv, points, c_in) x (c_in, c_out) -> (tv, points, c_out) on the VPU.

    c_in is a small Python int; each step lane-broadcasts one input channel against one
    weight row.  Only plain slice / broadcast / mul / add ops, so it lowers cleanly for any
    block shape and any c_out.
    """
    acc = xb[:, :, 0:1] * w2d[0:1, :][None]
    for c in range(1, c_in):
        acc = acc + xb[:, :, c:c + 1] * w2d[c:c + 1, :][None]
    return acc


def fcn_forward(x, w, b, gamma, beta, *, eps=1e-5, target_rows=1024):
    """relu(batchnorm1d(linear(x))) with training-mode (batch) statistics.

    x: (voxels, points, c_in); w: (c_out, c_in); b/gamma/beta: (c_out,).
    Returns (voxels, points, c_out) float32.
    """
    voxels, points, c_in = x.shape
    c_out = w.shape[0]
    n = voxels * points

    x = x.astype(jnp.float32)
    wt = jnp.transpose(w.astype(jnp.float32))            # (c_in, c_out)
    gamma = gamma.astype(jnp.float32)
    beta = beta.astype(jnp.float32)
    del b  # Linear bias cancels under training-mode BatchNorm (y - mean_y == z - mean_z)

    # ---- voxel-tile selection ------------------------------------------------------
    # ~target_rows (voxel*point) rows per grid step, capped so the lane-padded x/out
    # blocks stay well inside VMEM with double buffering.
    row_bytes = _round_up(points, 8) * 4 * (_round_up(c_in, 128) + _round_up(c_out, 128))
    max_tv = max(1, (12 * 1024 * 1024) // (2 * row_bytes))
    tv_target = max(1, min(voxels, max_tv, -(-target_rows // points)))
    tv = 1
    for d in range(tv_target, 0, -1):                    # largest divisor <= target
        if voxels % d == 0:
            tv = d
            break
    if tv < max(1, tv_target // 4):
        tv = tv_target                                    # accept a masked partial tile
    grid_v = pl.cdiv(voxels, tv)
    needs_mask = (voxels % tv) != 0

    vmem_limit = 32 * 1024 * 1024                         # safe on v5e/v6e/v7x

    # ---- pass 1: per-feature batch statistics of z = x @ W^T ------------------------
    def stats_kernel(x_ref, wt_ref, s_ref, q_ref):
        i = pl.program_id(0)

        @pl.when(i == 0)
        def _():
            s_ref[...] = jnp.zeros_like(s_ref)
            q_ref[...] = jnp.zeros_like(q_ref)

        z = _mac(x_ref[...], wt_ref[...], c_in)           # (tv, points, c_out)
        if needs_mask:
            row = jax.lax.broadcasted_iota(jnp.int32, (tv, 1, 1), 0)
            z = jnp.where(i * tv + row < voxels, z, 0.0)
        s_ref[...] += jnp.sum(z, axis=0)
        q_ref[...] += jnp.sum(z * z, axis=0)

    s_pp, q_pp = pl.pallas_call(
        stats_kernel,
        out_shape=(
            jax.ShapeDtypeStruct((points, c_out), jnp.float32),
            jax.ShapeDtypeStruct((points, c_out), jnp.float32),
        ),
        grid_spec=pltpu.PrefetchScalarGridSpec(
            num_scalar_prefetch=0,
            grid=(grid_v,),
            in_specs=[
                pl.BlockSpec((tv, points, c_in), lambda i: (i, 0, 0)),
                pl.BlockSpec((c_in, c_out), lambda i: (0, 0)),
            ],
            out_specs=(
                pl.BlockSpec((points, c_out), lambda i: (0, 0)),   # resident accumulators
                pl.BlockSpec((points, c_out), lambda i: (0, 0)),
            ),
        ),
        compiler_params=pltpu.CompilerParams(
            dimension_semantics=("arbitrary",), vmem_limit_bytes=vmem_limit),
    )(x, wt)

    # ---- tiny (c_out,) math in plain JAX: fold BN affine into scale/shift -----------
    s = jnp.sum(s_pp, axis=0)
    q = jnp.sum(q_pp, axis=0)
    mean_z = s / n
    var = jnp.maximum(q / n - mean_z * mean_z, 0.0)       # biased variance, clamped >= 0
    scale = gamma * jax.lax.rsqrt(var + eps)              # (c_out,)
    shift = (beta - mean_z * scale).reshape(1, c_out)     # (1, c_out)
    w_eff = wt * scale[None, :]                           # (c_in, c_out), scale folded in

    # ---- pass 2: streaming relu(x @ w_eff + shift), written in final layout ---------
    def fwd_kernel(x_ref, we_ref, shift_ref, o_ref):
        z = _mac(x_ref[...], we_ref[...], c_in)
        o_ref[...] = jnp.maximum(z + shift_ref[...][None], 0.0).astype(o_ref.dtype)

    out = pl.pallas_call(
        fwd_kernel,
        out_shape=jax.ShapeDtypeStruct((voxels, points, c_out), jnp.float32),
        grid_spec=pltpu.PrefetchScalarGridSpec(
            num_scalar_prefetch=0,
            grid=(grid_v,),
            in_specs=[
                pl.BlockSpec((tv, points, c_in), lambda i: (i, 0, 0)),
                pl.BlockSpec((c_in, c_out), lambda i: (0, 0)),
                pl.BlockSpec((1, c_out), lambda i: (0, 0)),
            ],
            out_specs=pl.BlockSpec((tv, points, c_out), lambda i: (i, 0, 0)),
        ),
        compiler_params=pltpu.CompilerParams(
            dimension_semantics=("parallel",), vmem_limit_bytes=vmem_limit),
    )(x, w_eff, shift)

    return out


def _reference(x, w, b, gamma, beta, eps=1e-5):
    voxels, points, _ = x.shape
    x2 = x.reshape(voxels * points, -1)
    y = x2 @ w.T + b
    mean = y.mean(axis=0, keepdims=True)
    var = ((y - mean) ** 2).mean(axis=0, keepdims=True)   # biased, like PyTorch BN
    yn = (y - mean) / jnp.sqrt(var + eps) * gamma + beta
    return jnp.maximum(yn, 0.0).reshape(voxels, points, -1)


if __name__ == "__main__":
    in_channels, out_channels = 4, 32

    key = jax.random.PRNGKey(0)
    kx, kw, kb, kg, kbe, kx2 = jax.random.split(key, 6)

    # Deterministic parameter init (PyTorch-like uniform bounds for Linear; random
    # gamma/beta to exercise the scale/shift folding).
    bound = 1.0 / (in_channels ** 0.5)
    w = jax.random.uniform(kw, (out_channels, in_channels), jnp.float32, -bound, bound)
    b = jax.random.uniform(kb, (out_channels,), jnp.float32, -bound, bound)
    gamma = jax.random.uniform(kg, (out_channels,), jnp.float32, 0.5, 1.5)
    beta = jax.random.uniform(kbe, (out_channels,), jnp.float32, -0.5, 0.5)

    # Small case (single tile).
    voxels, points = 2, 8
    x = jax.random.normal(kx, (voxels, points, in_channels), dtype=jnp.float32)
    out = jax.block_until_ready(fcn_forward(x, w, b, gamma, beta))
    ref = _reference(x, w, b, gamma, beta)
    assert out.shape == (voxels, points, out_channels)
    assert jnp.allclose(out, ref, atol=1e-4, rtol=1e-4), "mismatch vs reference (small)"

    # Larger case (multi-tile accumulation, points not a multiple of 8).
    voxels2, points2 = 100, 35     # tile = 25 voxels (875 rows) per grid step
    xl = jax.random.normal(kx2, (voxels2, points2, in_channels), dtype=jnp.float32)
    out2 = jax.block_until_ready(fcn_forward(xl, w, b, gamma, beta))
    ref2 = _reference(xl, w, b, gamma, beta)
    assert out2.shape == (voxels2, points2, out_channels)
    assert jnp.allclose(out2, ref2, atol=1e-3, rtol=1e-3), "mismatch vs reference (large)"

    print("KERNEL_OK")
</pallas_src>

<mosaic_0001>
module attributes {stable_mosaic.version = 11 : i64} {
  func.func @stats_kernel(%arg0: i32, %arg1: memref<2x8x4xf32, #tpu.memory_space<vmem>>, %arg2: memref<4x32xf32, #tpu.memory_space<vmem>>, %arg3: memref<8x32xf32, #tpu.memory_space<vmem>>, %arg4: memref<8x32xf32, #tpu.memory_space<vmem>>) attributes {dimension_semantics = [#tpu.dimension_semantics<arbitrary>], iteration_bounds = array<i64: 1>, scalar_prefetch = 0 : i64, scratch_operands = 0 : i64, tpu.core_type = #tpu.core_type<tc>, window_params = [{transform_indices = @transform_0, window_bounds = array<i64: 2, 8, 4>}, {pipeline_mode = #tpu.pipeline_mode<synchronous>, transform_indices = @transform_1, window_bounds = array<i64: 4, 32>}, {pipeline_mode = #tpu.pipeline_mode<synchronous>, transform_indices = @transform_2, window_bounds = array<i64: 8, 32>}, {pipeline_mode = #tpu.pipeline_mode<synchronous>, transform_indices = @transform_3, window_bounds = array<i64: 8, 32>}]} {
    %c0_i32 = arith.constant 0 : i32
    %0 = arith.cmpi eq, %arg0, %c0_i32 : i32
    %1 = arith.extui %0 : i1 to i32
    %c0_i32_0 = arith.constant 0 : i32
    %2 = arith.cmpi ne, %1, %c0_i32_0 : i32
    scf.if %2 {
      %cst_14 = arith.constant 0.000000e+00 : f32
      %41 = vector.broadcast %cst_14 : f32 to vector<8x32xf32>
      %c0_15 = arith.constant 0 : index
      %c0_16 = arith.constant 0 : index
      %42 = vector.load %arg3[%c0_15, %c0_16] : memref<8x32xf32, #tpu.memory_space<vmem>>, vector<8x32xf32>
      tpu.vector_store %arg3[%c0_15, %c0_16], %41 {strides = array<i32>} : memref<8x32xf32, #tpu.memory_space<vmem>>, vector<8x32xf32>,
      %cst_17 = arith.constant 0.000000e+00 : f32
      %43 = vector.broadcast %cst_17 : f32 to vector<8x32xf32>
      %c0_18 = arith.constant 0 : index
      %c0_19 = arith.constant 0 : index
      %44 = vector.load %arg4[%c0_18, %c0_19] : memref<8x32xf32, #tpu.memory_space<vmem>>, vector<8x32xf32>
      tpu.vector_store %arg4[%c0_18, %c0_19], %43 {strides = array<i32>} : memref<8x32xf32, #tpu.memory_space<vmem>>, vector<8x32xf32>,
    } else {
    }
    %c0 = arith.constant 0 : index
    %c0_1 = arith.constant 0 : index
    %c0_2 = arith.constant 0 : index
    %3 = vector.load %arg1[%c0, %c0_1, %c0_2] : memref<2x8x4xf32, #tpu.memory_space<vmem>>, vector<2x8x4xf32>
    %c0_3 = arith.constant 0 : index
    %c0_4 = arith.constant 0 : index
    %4 = vector.load %arg2[%c0_3, %c0_4] : memref<4x32xf32, #tpu.memory_space<vmem>>, vector<4x32xf32>
    %5 = vector.extract_strided_slice %3 {offsets = [0, 0, 0], sizes = [2, 8, 1], strides = [1, 1, 1]} : vector<2x8x4xf32> to vector<2x8x1xf32>
    %6 = vector.extract_strided_slice %4 {offsets = [0, 0], sizes = [1, 32], strides = [1, 1]} : vector<4x32xf32> to vector<1x32xf32>
    %7 = vector.shape_cast %6 : vector<1x32xf32> to vector<1x1x32xf32>
    %8 = vector.broadcast %5 : vector<2x8x1xf32> to vector<2x8x32xf32>
    %9 = vector.broadcast %7 : vector<1x1x32xf32> to vector<2x8x32xf32>
    %10 = arith.mulf %8, %9 : vector<2x8x32xf32>
    %11 = vector.extract_strided_slice %3 {offsets = [0, 0, 1], sizes = [2, 8, 1], strides = [1, 1, 1]} : vector<2x8x4xf32> to vector<2x8x1xf32>
    %12 = vector.extract_strided_slice %4 {offsets = [1, 0], sizes = [1, 32], strides = [1, 1]} : vector<4x32xf32> to vector<1x32xf32>
    %13 = vector.shape_cast %12 : vector<1x32xf32> to vector<1x1x32xf32>
    %14 = vector.broadcast %11 : vector<2x8x1xf32> to vector<2x8x32xf32>
    %15 = vector.broadcast %13 : vector<1x1x32xf32> to vector<2x8x32xf32>
    %16 = arith.mulf %14, %15 : vector<2x8x32xf32>
    %17 = arith.addf %10, %16 : vector<2x8x32xf32>
    %18 = vector.extract_strided_slice %3 {offsets = [0, 0, 2], sizes = [2, 8, 1], strides = [1, 1, 1]} : vector<2x8x4xf32> to vector<2x8x1xf32>
    %19 = vector.extract_strided_slice %4 {offsets = [2, 0], sizes = [1, 32], strides = [1, 1]} : vector<4x32xf32> to vector<1x32xf32>
    %20 = vector.shape_cast %19 : vector<1x32xf32> to vector<1x1x32xf32>
    %21 = vector.broadcast %18 : vector<2x8x1xf32> to vector<2x8x32xf32>
    %22 = vector.broadcast %20 : vector<1x1x32xf32> to vector<2x8x32xf32>
    %23 = arith.mulf %21, %22 : vector<2x8x32xf32>
    %24 = arith.addf %17, %23 : vector<2x8x32xf32>
    %25 = vector.extract_strided_slice %3 {offsets = [0, 0, 3], sizes = [2, 8, 1], strides = [1, 1, 1]} : vector<2x8x4xf32> to vector<2x8x1xf32>
    %26 = vector.extract_strided_slice %4 {offsets = [3, 0], sizes = [1, 32], strides = [1, 1]} : vector<4x32xf32> to vector<1x32xf32>
    %27 = vector.shape_cast %26 : vector<1x32xf32> to vector<1x1x32xf32>
    %28 = vector.broadcast %25 : vector<2x8x1xf32> to vector<2x8x32xf32>
    %29 = vector.broadcast %27 : vector<1x1x32xf32> to vector<2x8x32xf32>
    %30 = arith.mulf %28, %29 : vector<2x8x32xf32>
    %31 = arith.addf %24, %30 : vector<2x8x32xf32>
    %c0_5 = arith.constant 0 : index
    %c0_6 = arith.constant 0 : index
    %32 = vector.load %arg3[%c0_5, %c0_6] : memref<8x32xf32, #tpu.memory_space<vmem>>, vector<8x32xf32>
    %cst = arith.constant dense<0.000000e+00> : vector<8x32xf32>
    %33 = vector.multi_reduction <add>, %31, %cst [0] : vector<2x8x32xf32> to vector<8x32xf32>
    %34 = arith.addf %32, %33 : vector<8x32xf32>
    %c0_7 = arith.constant 0 : index
    %c0_8 = arith.constant 0 : index
    %35 = vector.load %arg3[%c0_7, %c0_8] : memref<8x32xf32, #tpu.memory_space<vmem>>, vector<8x32xf32>
    tpu.vector_store %arg3[%c0_7, %c0_8], %34 {strides = array<i32>} : memref<8x32xf32, #tpu.memory_space<vmem>>, vector<8x32xf32>,
    %c0_9 = arith.constant 0 : index
    %c0_10 = arith.constant 0 : index
    %36 = vector.load %arg4[%c0_9, %c0_10] : memref<8x32xf32, #tpu.memory_space<vmem>>, vector<8x32xf32>
    %37 = arith.mulf %31, %31 : vector<2x8x32xf32>
    %cst_11 = arith.constant dense<0.000000e+00> : vector<8x32xf32>
    %38 = vector.multi_reduction <add>, %37, %cst_11 [0] : vector<2x8x32xf32> to vector<8x32xf32>
    %39 = arith.addf %36, %38 : vector<8x32xf32>
    %c0_12 = arith.constant 0 : index
    %c0_13 = arith.constant 0 : index
    %40 = vector.load %arg4[%c0_12, %c0_13] : memref<8x32xf32, #tpu.memory_space<vmem>>, vector<8x32xf32>
    tpu.vector_store %arg4[%c0_12, %c0_13], %39 {strides = array<i32>} : memref<8x32xf32, #tpu.memory_space<vmem>>, vector<8x32xf32>,
    return
  }
  func.func @transform_0(%arg0: i32) -> (i32, i32, i32) {
    %c0_i32 = arith.constant 0 : i32
    %c0_i32_0 = arith.constant 0 : i32
    %c0_i32_1 = arith.constant 0 : i32
    return %arg0, %c0_i32, %c0_i32_0 : i32, i32, i32
  }
  func.func @transform_1(%arg0: i32) -> (i32, i32) {
    %c0_i32 = arith.constant 0 : i32
    %c0_i32_0 = arith.constant 0 : i32
    %c0_i32_1 = arith.constant 0 : i32
    return %c0_i32, %c0_i32_0 : i32, i32
  }
  func.func @transform_2(%arg0: i32) -> (i32, i32) {
    %c0_i32 = arith.constant 0 : i32
    %c0_i32_0 = arith.constant 0 : i32
    %c0_i32_1 = arith.constant 0 : i32
    return %c0_i32, %c0_i32_0 : i32, i32
  }
  func.func @transform_3(%arg0: i32) -> (i32, i32) {
    %c0_i32 = arith.constant 0 : i32
    %c0_i32_0 = arith.constant 0 : i32
    %c0_i32_1 = arith.constant 0 : i32
    return %c0_i32, %c0_i32_0 : i32, i32
  }
}

</mosaic_0001>

<llo_original>
// kernel: tpu_custom_call.1
$region0: #{tpu_custom_call.1}
  #allocation0 [shape = 'u32[]', space=smem, size = 0x4, offset = 0x4, fixed_abs, tag = 'smem constant byte address 0x4 - core index']
  #allocation1 [shape = 'u32[144,128]{1,0:T(1,128)}', space=vmem, size = 0x12000, scoped, tag = 'internal scratch']
  %s0 = inlined_call_operand.vmem [shape: f32[2,8,4], index: 0, kind: input, shape index: {}]
  %s1 = inlined_call_operand.vmem [shape: f32[4,32], index: 1, kind: input, shape index: {}]
  %s2 = inlined_call_operand.hbm [shape: f32[8,32], index: 2, kind: output, shape index: {0}]
  %s3 = inlined_call_operand.hbm [shape: f32[8,32], index: 3, kind: output, shape index: {1}]
  %4 = xla_tuple %s2, %s3
  %s5 = sld [smem:[#allocation0]]
  $region30: #{tpu_custom_call.1} parent=0
    _
  %s7 = ssub.s32 1, %s5
  %s8 = scalar_select 0, %s7, %s5
  $region1: #{tpu_custom_call.1} parent=0
    #allocation2 [shape = 'u8[4096]{0}', space=vmem, size = 0x1000, scoped, tag = 'output window, operand 0, single buffered']
    #allocation3 [shape = 's32[1]{0}', space=sflag, size = 0x4, scoped, tag = 'scoped memory for tpu_custom_call.1']
    #allocation4 [shape = 'u8[4096]{0}', space=vmem, size = 0x1000, scoped, tag = 'output window, operand 1, single buffered']
    #allocation5 [shape = 's32[1]{0}', space=sflag, size = 0x4, scoped, tag = 'scoped memory for tpu_custom_call.1']
    %9 = vsyncpa [#allocation3], 0
    %10 = vsyncpa [#allocation5], 0
    // Predicated region
    $region2: #{tpu_custom_call.1} parent=1 // pred_check
      _
    $region3: #{tpu_custom_call.1} parent=1 // pred_check_branch
      %12 = sbr.rel (0) target = $region5
    $region4: #{tpu_custom_call.1} parent=1 // pred_region
      _
    $region5: #{tpu_custom_call.1} parent=1 // pred_fallthru
      _
    // Predicated region
    $region6: #{tpu_custom_call.1} parent=1 // pred_check
      _
    $region7: #{tpu_custom_call.1} parent=1 // pred_check_branch
      %14 = sbr.rel (0) target = $region9
    $region8: #{tpu_custom_call.1} parent=1 // pred_region
      _
    $region9: #{tpu_custom_call.1} parent=1 // pred_fallthru
      _
    %p15 = scmp.eq.s32.totalorder 0, 0
    // Predicated region
    $region10: #{tpu_custom_call.1} parent=1 // pred_check
      %p16 = pneg %p15
    $region11: #{tpu_custom_call.1} parent=1 // pred_check_branch
      %18 = sbr.rel (%p16) target = $region13
    $region12: #{tpu_custom_call.1} parent=1 // pred_region
      %vm19 = vcmask 261120
      %20 = vst.msk [vmem:[#allocation2] sm:$0xff] %vm19, 0.0
      %21 = vst.msk [vmem:[#allocation4] sm:$0xff] %vm19, 0.0
    $region13: #{tpu_custom_call.1} parent=1 // pred_fallthru
      _
    %v22 = vld [vmem:[%s0] sm:$0xff]
    %v23 = vld [vmem:[%s0 + $0x8] sm:$0xff]
    %v24 = vld [vmem:[%s1] sm:$0xf]
    %26 = vset.pattern.permute.xlu0 0
    %27 = vperm.xlu0 %26, %v22
    %v28 = vpop.permute.xlu0 %27
    %31 = vset.pattern.permute.xlu0 0
    %32 = vperm.xlu0 %31, %v23
    %v33 = vpop.permute.xlu0 %32
    %v35 = vlaneseq
    %v36 = vshrl.u32 %v35, 7
    %v37 = vsub.s32 0, %v36
    %v38 = vrot.slane %v24, %v37
    %v39 = vmul.f32 %v28, %v38
    %v40 = vmul.f32 %v33, %v38
    %41 = vset.pattern.permute.xlu0 1
    %42 = vperm.xlu0 %41, %v22
    %v43 = vpop.permute.xlu0 %42
    %45 = vset.pattern.permute.xlu0 1
    %46 = vperm.xlu0 %45, %v23
    %v47 = vpop.permute.xlu0 %46
    %v49 = vlaneseq
    %v50 = vshrl.u32 %v49, 7
    %v51 = vsub.s32 1, %v50
    %v52 = vrot.slane %v24, %v51
    %v53 = vmul.f32 %v43, %v52
    %v54 = vmul.f32 %v47, %v52
    %v55 = vadd.f32 %v39, %v53
    %v56 = vadd.f32 %v40, %v54
    %57 = vset.pattern.permute.xlu0 2
    %58 = vperm.xlu0 %57, %v22
    %v59 = vpop.permute.xlu0 %58
    %61 = vset.pattern.permute.xlu0 2
    %62 = vperm.xlu0 %61, %v23
    %v63 = vpop.permute.xlu0 %62
    %v65 = vlaneseq
    %v66 = vshrl.u32 %v65, 7
    %v67 = vsub.s32 2, %v66
    %v68 = vrot.slane %v24, %v67
    %v69 = vmul.f32 %v59, %v68
    %v70 = vmul.f32 %v63, %v68
    %v71 = vadd.f32 %v55, %v69
    %v72 = vadd.f32 %v56, %v70
    %73 = vset.pattern.permute.xlu0 3
    %74 = vperm.xlu0 %73, %v22
    %v75 = vpop.permute.xlu0 %74
    %77 = vset.pattern.permute.xlu0 3
    %78 = vperm.xlu0 %77, %v23
    %v79 = vpop.permute.xlu0 %78
    %v81 = vlaneseq
    %v82 = vshrl.u32 %v81, 7
    %v83 = vsub.s32 3, %v82
    %v84 = vrot.slane %v24, %v83
    %v85 = vmul.f32 %v75, %v84
    %v86 = vmul.f32 %v79, %v84
    %v87 = vadd.f32 %v71, %v85
    %v88 = vadd.f32 %v72, %v86
    %v89 = vld [vmem:[#allocation2] sm:$0xff]
    %vm90 = vcmask 261120
    %v91 = vsel %vm90, %v87, 0.0
    %v92 = vsel %vm90, %v88, 0.0
    %v93 = vadd.f32 %v91, %v92
    %v94 = vadd.f32 %v89, %v93
    %95 = vst.msk [vmem:[#allocation2] sm:$0xff] %vm90, %v94
    %v96 = vld [vmem:[#allocation4] sm:$0xff]
    %v97 = vmul.f32 %v87, %v87
    %v98 = vmul.f32 %v88, %v88
    %v99 = vsel %vm90, %v97, 0.0
    %v100 = vsel %vm90, %v98, 0.0
    %v101 = vadd.f32 %v99, %v100
    %v102 = vadd.f32 %v96, %v101
    %103 = vst.msk [vmem:[#allocation4] sm:$0xff] %vm90, %v102
    // Predicated region
    $region14: #{tpu_custom_call.1} parent=1 // pred_check
      _
    $region15: #{tpu_custom_call.1} parent=1 // pred_check_branch
      %105 = sbr.rel (0) target = $region17
    $region16: #{tpu_custom_call.1} parent=1 // pred_region
      %s107 = ssub.s32 128, 128
      %108 = vsyncadd [#allocation3], %s107
      %s110 = sshll.u32 [#allocation2], 4
      %s111 = int_to_ptr.vmem [resolvable:$true] %s110
      %113 = dma.vmem_to_hbm [thread:$0]  %s111, 128, %s2, [#allocation3]
    $region17: #{tpu_custom_call.1} parent=1 // pred_fallthru
      _
    // Predicated region
    $region18: #{tpu_custom_call.1} parent=1 // pred_check
      _
    $region19: #{tpu_custom_call.1} parent=1 // pred_check_branch
      %115 = sbr.rel (0) target = $region21
    $region20: #{tpu_custom_call.1} parent=1 // pred_region
      %s117 = ssub.s32 128, 128
      %118 = vsyncadd [#allocation5], %s117
      %s120 = sshll.u32 [#allocation4], 4
      %s121 = int_to_ptr.vmem [resolvable:$true] %s120
      %123 = dma.vmem_to_hbm [thread:$0]  %s121, 128, %s3, [#allocation5]
    $region21: #{tpu_custom_call.1} parent=1 // pred_fallthru
      _
    // Predicated region
    $region22: #{tpu_custom_call.1} parent=1 // pred_check
      _
    $region23: #{tpu_custom_call.1} parent=1 // pred_check_branch
      %125 = sbr.rel (0) target = $region25
    $region24: #{tpu_custom_call.1} parent=1 // pred_region
      %126 = dma.done [#allocation3], 128
    $region25: #{tpu_custom_call.1} parent=1 // pred_fallthru
      _
    // Predicated region
    $region26: #{tpu_custom_call.1} parent=1 // pred_check
      _
    $region27: #{tpu_custom_call.1} parent=1 // pred_check_branch
      %128 = sbr.rel (0) target = $region29
    $region28: #{tpu_custom_call.1} parent=1 // pred_region
      %129 = dma.done [#allocation5], 128
    $region29: #{tpu_custom_call.1} parent=1 // pred_fallthru
      _
    %130 = vsyncpa [#allocation3], 1
    %131 = vsyncpa [#allocation5], 1

</llo_original>
